<compile_context>
chip_gen: v7x
topology: tpu7x:2x2x1
jax: 0.10.0
libtpu: 0.0.40
codegen_flags: <defaults>
</compile_context>

<pallas_src>
import jax
import jax.numpy as jnp
from jax.experimental import pallas as pl
from jax.experimental.pallas import tpu as pltpu

BATCH_TILE = 512   # rows per grid step (sweep 512-1024; 128 was overhead-bound)


# ----------------------------------------------------------------------------
# Pallas kernel: the wrapped module's forward (Linear + ReLU) — the hot path.
# ----------------------------------------------------------------------------
def _linear_relu_kernel(x_ref, w_ref, b_ref, o_ref):
    # x_ref: (TB, D_in) f32    w_ref: (D_in, D_out) bf16
    # b_ref: (1, D_out) f32    o_ref: (TB, D_out) f32
    # In-kernel bf16 cast of x, MXU matmul with f32 accumulate (Mosaic pads
    # K,N < 128 into the systolic array), f32 epilogue, cast only at store.
    x_bf = x_ref[...].astype(jnp.bfloat16)
    acc = jnp.dot(x_bf, w_ref[...], preferred_element_type=jnp.float32)
    o_ref[...] = jnp.maximum(acc + b_ref[...], 0.0).astype(o_ref.dtype)


def _make_compiled_forward(weight, bias, *, batch_tile=BATCH_TILE):
    """Build the jitted pallas_call that plays the role of torch.compile(module)."""
    d_in, d_out = weight.shape
    # One-time parameter prep: W in bf16 at its true (d_in, d_out) shape
    # (no dead zero rows/cols -> no dead weight DMA); bias stays f32.
    w_bf = weight.astype(jnp.bfloat16)
    b_2d = bias.astype(jnp.float32).reshape(1, d_out)

    @jax.jit
    def _forward(x, w, b2):
        bsz = x.shape[0]
        # Bucket only the batch axis of the narrow (B, d_in) array; feature
        # (K) dim stays at its true width so no zero-padding is needed for
        # dot correctness.  Pad rows are zeros (ReLU(bias) rows come out of
        # the kernel for them; harmless, sliced off below).
        b_rows = batch_tile * pl.cdiv(bsz, batch_tile)
        x_p = x if b_rows == bsz else jnp.pad(x, ((0, b_rows - bsz), (0, 0)))

        cost = pl.CostEstimate(
            flops=2 * b_rows * d_in * d_out,
            transcendentals=0,
            bytes_accessed=(b_rows * d_in * x.dtype.itemsize   # x read
                            + d_in * d_out * 2                  # W (bf16)
                            + d_out * 4                         # bias
                            + b_rows * d_out * 4),              # out write
        )

        y_p = pl.pallas_call(
            _linear_relu_kernel,
            out_shape=jax.ShapeDtypeStruct((b_rows, d_out), jnp.float32),
            grid=(b_rows // batch_tile,),
            in_specs=[
                # x tiled over batch -> double-buffered DMA overlaps compute.
                # Last dim d_in == full array dim satisfies the (8,128) rule.
                pl.BlockSpec((batch_tile, d_in), lambda i: (i, 0)),
                # W / b: constant index_map -> VMEM-resident across the grid.
                pl.BlockSpec((d_in, d_out), lambda i: (0, 0)),
                pl.BlockSpec((1, d_out), lambda i: (0, 0)),
            ],
            # True-width output block (d_out == full dim): 4x fewer output
            # bytes than a 128-lane-padded f32 slab; masked vst accepted.
            out_specs=pl.BlockSpec((batch_tile, d_out), lambda i: (i, 0)),
            compiler_params=pltpu.CompilerParams(
                # Independent batch tiles -> shard across both TCs on v7x
                # (grid >= 2 whenever B > batch_tile).
                dimension_semantics=("parallel",),
                # Plenty of headroom even on v7x's 64 MiB physical VMEM.
                vmem_limit_bytes=32 * 1024 * 1024,
            ),
            cost_estimate=cost,
        )(x_p, w, b2)

        # Only the batch bucketing (if any) is stripped; no feature-dim slice.
        y = y_p if b_rows == bsz else y_p[:bsz]
        return y.astype(x.dtype)

    def forward(x):
        return _forward(x, w_bf, b_2d)

    return forward


# ----------------------------------------------------------------------------
# The wrapped "module": a tiny deterministic Linear+ReLU (stand-in for the
# arbitrary nn.Module that CompiledWrapper would receive).
# ----------------------------------------------------------------------------
class SimpleLinearReLU:
    def __init__(self, d_in=32, d_out=32):
        self.in_features = d_in
        self.out_features = d_out
        # Deterministic parameter init (synthetic; no checkpoint loading).
        k_w, k_b = jax.random.split(jax.random.PRNGKey(42))
        # Stored as (d_in, d_out) so the kernel does x @ W directly
        # (transpose of PyTorch nn.Linear's (out, in) layout).
        self.weight = jax.random.normal(k_w, (d_in, d_out), jnp.float32) * 0.1
        self.bias = jax.random.normal(k_b, (d_out,), jnp.float32) * 0.1

    def __call__(self, x):
        # Pure-JAX f32 reference forward (what torch.compile would have wrapped).
        return jnp.maximum(x @ self.weight + self.bias.reshape(1, -1), 0.0)


# ----------------------------------------------------------------------------
# CompiledWrapper: mirrors the PyTorch class semantics.
#   - self.original_type records the wrapped module's type
#   - self.compiled is the "compiled" forward (here: jitted Pallas kernel)
#   - public attributes of the wrapped module are mirrored onto the wrapper
#   - forward/__call__ delegate to the compiled callable
# ----------------------------------------------------------------------------
class CompiledWrapper:
    def __init__(self, module):
        self.original_type = type(module)
        try:
            # TODO(synk): torch.compile(module, backend='hpu_backend') has no
            # Pallas equivalent; we compile the wrapped forward with
            # jit + pallas_call instead.
            self.compiled = _make_compiled_forward(module.weight, module.bias)
        except Exception as e:  # pragma: no cover - mirrors torch fallback
            print(f"Warning: Failed to compile module "
                  f"{type(module).__name__}: {str(e)}")
            self.compiled = module
        # Mirror public attributes of the wrapped module (as in the PyTorch code).
        for name in dir(module):
            if not name.startswith("_") and name not in dir(self):
                try:
                    setattr(self, name, getattr(module, name))
                except (AttributeError, TypeError):
                    continue

    def forward(self, *args, **kwargs):
        return self.compiled(*args, **kwargs)

    def __call__(self, *args, **kwargs):
        return self.compiled(*args, **kwargs)


if __name__ == "__main__":
    # Small deterministic input consistent with the wrapped Linear(32 -> 32).
    x = jax.random.normal(jax.random.PRNGKey(0), (8, 32), jnp.float32)

    inner = SimpleLinearReLU(d_in=32, d_out=32)
    wrapper = CompiledWrapper(inner)

    # Wrapped-module attributes are mirrored onto the wrapper.
    assert wrapper.in_features == 32 and wrapper.out_features == 32
    assert wrapper.original_type is SimpleLinearReLU

    out = wrapper(x)
    out = jax.block_until_ready(out)

    # Check against the pure-JAX f32 reference.  Tolerance loosened because
    # the kernel feeds the MXU bf16 inputs (f32 accumulate) — callers should
    # expect bf16-level quantization of x and W relative to a pure-f32 path.
    ref = inner(x)
    assert out.shape == (8, 32) and out.dtype == jnp.float32
    assert jnp.allclose(out, ref, atol=2e-2, rtol=2e-2)

    print("KERNEL_OK")
</pallas_src>

<mosaic_0001>
module attributes {stable_mosaic.version = 11 : i64} {
  func.func @_linear_relu_kernel(%arg0: i32, %arg1: memref<512x32xf32, #tpu.memory_space<vmem>>, %arg2: memref<32x32xbf16, #tpu.memory_space<vmem>>, %arg3: memref<1x32xf32, #tpu.memory_space<vmem>>, %arg4: memref<512x32xf32, #tpu.memory_space<vmem>>) attributes {dimension_semantics = [#tpu.dimension_semantics<parallel>], iteration_bounds = array<i64: 1>, scalar_prefetch = 0 : i64, scratch_operands = 0 : i64, tpu.core_type = #tpu.core_type<tc>, window_params = [{transform_indices = @transform_0, window_bounds = array<i64: 512, 32>}, {pipeline_mode = #tpu.pipeline_mode<synchronous>, transform_indices = @transform_1, window_bounds = array<i64: 32, 32>}, {pipeline_mode = #tpu.pipeline_mode<synchronous>, transform_indices = @transform_2, window_bounds = array<i64: 1, 32>}, {transform_indices = @transform_3, window_bounds = array<i64: 512, 32>}]} {
    %c0 = arith.constant 0 : index
    %c0_0 = arith.constant 0 : index
    %0 = vector.load %arg1[%c0, %c0_0] : memref<512x32xf32, #tpu.memory_space<vmem>>, vector<512x32xf32>
    %1 = arith.truncf %0 : vector<512x32xf32> to vector<512x32xbf16>
    %c0_1 = arith.constant 0 : index
    %c0_2 = arith.constant 0 : index
    %2 = vector.load %arg2[%c0_1, %c0_2] : memref<32x32xbf16, #tpu.memory_space<vmem>>, vector<32x32xbf16>
    %cst = arith.constant dense<0.000000e+00> : vector<512x32xf32>
    %3 = tpu.matmul %1, %2, %cst {dimension_numbers = #tpu.dot_dimension_numbers<[1], [0], [0], [1], [0, 0, 1, 1], [], []>} : vector<512x32xbf16>, vector<32x32xbf16>, vector<512x32xf32> -> vector<512x32xf32>
    %c0_3 = arith.constant 0 : index
    %c0_4 = arith.constant 0 : index
    %4 = vector.load %arg3[%c0_3, %c0_4] : memref<1x32xf32, #tpu.memory_space<vmem>>, vector<1x32xf32>
    %5 = vector.broadcast %4 : vector<1x32xf32> to vector<512x32xf32>
    %6 = arith.addf %3, %5 : vector<512x32xf32>
    %cst_5 = arith.constant 0.000000e+00 : f32
    %7 = vector.broadcast %cst_5 : f32 to vector<512x32xf32>
    %8 = arith.maximumf %6, %7 : vector<512x32xf32>
    %c0_6 = arith.constant 0 : index
    %c0_7 = arith.constant 0 : index
    %9 = vector.load %arg4[%c0_6, %c0_7] : memref<512x32xf32, #tpu.memory_space<vmem>>, vector<512x32xf32>
    tpu.vector_store %arg4[%c0_6, %c0_7], %8 {strides = array<i32>} : memref<512x32xf32, #tpu.memory_space<vmem>>, vector<512x32xf32>,
    return
  }
  func.func @transform_0(%arg0: i32) -> (i32, i32) {
    %c0_i32 = arith.constant 0 : i32
    %c0_i32_0 = arith.constant 0 : i32
    return %arg0, %c0_i32 : i32, i32
  }
  func.func @transform_1(%arg0: i32) -> (i32, i32) {
    %c0_i32 = arith.constant 0 : i32
    %c0_i32_0 = arith.constant 0 : i32
    %c0_i32_1 = arith.constant 0 : i32
    return %c0_i32, %c0_i32_0 : i32, i32
  }
  func.func @transform_2(%arg0: i32) -> (i32, i32) {
    %c0_i32 = arith.constant 0 : i32
    %c0_i32_0 = arith.constant 0 : i32
    %c0_i32_1 = arith.constant 0 : i32
    return %c0_i32, %c0_i32_0 : i32, i32
  }
  func.func @transform_3(%arg0: i32) -> (i32, i32) {
    %c0_i32 = arith.constant 0 : i32
    %c0_i32_0 = arith.constant 0 : i32
    return %arg0, %c0_i32 : i32, i32
  }
}

</mosaic_0001>

<llo_original>
// kernel: _forward.1
$region0: #{_forward.1}
  #allocation0 [shape = 'u32[]', space=smem, size = 0x4, offset = 0x4, fixed_abs, tag = 'smem constant byte address 0x4 - core index']
  #allocation1 [shape = 'u32[144,128]{1,0:T(1,128)}', space=vmem, size = 0x12000, scoped, tag = 'internal scratch']
  %s0 = inlined_call_operand.vmem [shape: f32[512,32], index: 0, kind: input, shape index: {}]
  %s1 = inlined_call_operand.vmem [shape: bf16[32,32], index: 1, kind: input, shape index: {}]
  %s2 = inlined_call_operand.vmem [shape: f32[1,32], index: 2, kind: input, shape index: {}]
  %s3 = inlined_call_operand.vmem [shape: f32[512,32], index: 3, kind: output, shape index: {}]
  %s4 = sld [smem:[#allocation0]]
  $region22: #{_forward.1} parent=0
    _
  %s6 = ssub.s32 1, %s4
  %s7 = scalar_select 0, %s6, %s4
  // Predicated region
  $region2: #{_forward.1} parent=0 // pred_check
    _
  $region3: #{_forward.1} parent=0 // pred_check_branch
    %9 = sbr.rel (0) target = $region5
  $region4: #{_forward.1} parent=0 // pred_region
    _
  $region5: #{_forward.1} parent=0 // pred_fallthru
    _
  // Predicated region
  $region6: #{_forward.1} parent=0 // pred_check
    _
  $region7: #{_forward.1} parent=0 // pred_check_branch
    %11 = sbr.rel (0) target = $region9
  $region8: #{_forward.1} parent=0 // pred_region
    _
  $region9: #{_forward.1} parent=0 // pred_fallthru
    _
  // Predicated region
  $region10: #{_forward.1} parent=0 // pred_check
    _
  $region11: #{_forward.1} parent=0 // pred_check_branch
    %13 = sbr.rel (0) target = $region13
  $region12: #{_forward.1} parent=0 // pred_region
    _
  $region13: #{_forward.1} parent=0 // pred_fallthru
    _
  %v15 = vld [vmem:[%s0] sm:$0xff]
  %v16 = vld [vmem:[%s0 + $0x8] sm:$0xff]
  %v17 = vld [vmem:[%s0 + $0x10] sm:$0xff]
  %v18 = vld [vmem:[%s0 + $0x18] sm:$0xff]
  %v19 = vld [vmem:[%s0 + $0x20] sm:$0xff]
  %v20 = vld [vmem:[%s0 + $0x28] sm:$0xff]
  %v21 = vld [vmem:[%s0 + $0x30] sm:$0xff]
  %v22 = vld [vmem:[%s0 + $0x38] sm:$0xff]
  %v23 = vld [vmem:[%s0 + $0x40] sm:$0xff]
  %v24 = vld [vmem:[%s0 + $0x48] sm:$0xff]
  %v25 = vld [vmem:[%s0 + $0x50] sm:$0xff]
  %v26 = vld [vmem:[%s0 + $0x58] sm:$0xff]
  %v27 = vld [vmem:[%s0 + $0x60] sm:$0xff]
  %v28 = vld [vmem:[%s0 + $0x68] sm:$0xff]
  %v29 = vld [vmem:[%s0 + $0x70] sm:$0xff]
  %v30 = vld [vmem:[%s0 + $0x78] sm:$0xff]
  %v31 = vld [vmem:[%s0 + $0x80] sm:$0xff]
  %v32 = vld [vmem:[%s0 + $0x88] sm:$0xff]
  %v33 = vld [vmem:[%s0 + $0x90] sm:$0xff]
  %v34 = vld [vmem:[%s0 + $0x98] sm:$0xff]
  %v35 = vld [vmem:[%s0 + $0xa0] sm:$0xff]
  %v36 = vld [vmem:[%s0 + $0xa8] sm:$0xff]
  %v37 = vld [vmem:[%s0 + $0xb0] sm:$0xff]
  %v38 = vld [vmem:[%s0 + $0xb8] sm:$0xff]
  %v39 = vld [vmem:[%s0 + $0xc0] sm:$0xff]
  %v40 = vld [vmem:[%s0 + $0xc8] sm:$0xff]
  %v41 = vld [vmem:[%s0 + $0xd0] sm:$0xff]
  %v42 = vld [vmem:[%s0 + $0xd8] sm:$0xff]
  %v43 = vld [vmem:[%s0 + $0xe0] sm:$0xff]
  %v44 = vld [vmem:[%s0 + $0xe8] sm:$0xff]
  %v45 = vld [vmem:[%s0 + $0xf0] sm:$0xff]
  %v46 = vld [vmem:[%s0 + $0xf8] sm:$0xff]
  %v47 = vld [vmem:[%s0 + $0x100] sm:$0xff]
  %v48 = vld [vmem:[%s0 + $0x108] sm:$0xff]
  %v49 = vld [vmem:[%s0 + $0x110] sm:$0xff]
  %v50 = vld [vmem:[%s0 + $0x118] sm:$0xff]
  %v51 = vld [vmem:[%s0 + $0x120] sm:$0xff]
  %v52 = vld [vmem:[%s0 + $0x128] sm:$0xff]
  %v53 = vld [vmem:[%s0 + $0x130] sm:$0xff]
  %v54 = vld [vmem:[%s0 + $0x138] sm:$0xff]
  %v55 = vld [vmem:[%s0 + $0x140] sm:$0xff]
  %v56 = vld [vmem:[%s0 + $0x148] sm:$0xff]
  %v57 = vld [vmem:[%s0 + $0x150] sm:$0xff]
  %v58 = vld [vmem:[%s0 + $0x158] sm:$0xff]
  %v59 = vld [vmem:[%s0 + $0x160] sm:$0xff]
  %v60 = vld [vmem:[%s0 + $0x168] sm:$0xff]
  %v61 = vld [vmem:[%s0 + $0x170] sm:$0xff]
  %v62 = vld [vmem:[%s0 + $0x178] sm:$0xff]
  %v63 = vld [vmem:[%s0 + $0x180] sm:$0xff]
  %v64 = vld [vmem:[%s0 + $0x188] sm:$0xff]
  %v65 = vld [vmem:[%s0 + $0x190] sm:$0xff]
  %v66 = vld [vmem:[%s0 + $0x198] sm:$0xff]
  %v67 = vld [vmem:[%s0 + $0x1a0] sm:$0xff]
  %v68 = vld [vmem:[%s0 + $0x1a8] sm:$0xff]
  %v69 = vld [vmem:[%s0 + $0x1b0] sm:$0xff]
  %v70 = vld [vmem:[%s0 + $0x1b8] sm:$0xff]
  %v71 = vld [vmem:[%s0 + $0x1c0] sm:$0xff]
  %v72 = vld [vmem:[%s0 + $0x1c8] sm:$0xff]
  %v73 = vld [vmem:[%s0 + $0x1d0] sm:$0xff]
  %v74 = vld [vmem:[%s0 + $0x1d8] sm:$0xff]
  %v75 = vld [vmem:[%s0 + $0x1e0] sm:$0xff]
  %v76 = vld [vmem:[%s0 + $0x1e8] sm:$0xff]
  %v77 = vld [vmem:[%s0 + $0x1f0] sm:$0xff]
  %v78 = vld [vmem:[%s0 + $0x1f8] sm:$0xff]
  %v79 = vpack.c.bf16 %v16, %v15
  %v80 = vpack.c.bf16 %v18, %v17
  %v81 = vpack.c.bf16 %v20, %v19
  %v82 = vpack.c.bf16 %v22, %v21
  %v83 = vpack.c.bf16 %v24, %v23
  %v84 = vpack.c.bf16 %v26, %v25
  %v85 = vpack.c.bf16 %v28, %v27
  %v86 = vpack.c.bf16 %v30, %v29
  %v87 = vpack.c.bf16 %v32, %v31
  %v88 = vpack.c.bf16 %v34, %v33
  %v89 = vpack.c.bf16 %v36, %v35
  %v90 = vpack.c.bf16 %v38, %v37
  %v91 = vpack.c.bf16 %v40, %v39
  %v92 = vpack.c.bf16 %v42, %v41
  %v93 = vpack.c.bf16 %v44, %v43
  %v94 = vpack.c.bf16 %v46, %v45
  %v95 = vpack.c.bf16 %v48, %v47
  %v96 = vpack.c.bf16 %v50, %v49
  %v97 = vpack.c.bf16 %v52, %v51
  %v98 = vpack.c.bf16 %v54, %v53
  %v99 = vpack.c.bf16 %v56, %v55
  %v100 = vpack.c.bf16 %v58, %v57
  %v101 = vpack.c.bf16 %v60, %v59
  %v102 = vpack.c.bf16 %v62, %v61
  %v103 = vpack.c.bf16 %v64, %v63
  %v104 = vpack.c.bf16 %v66, %v65
  %v105 = vpack.c.bf16 %v68, %v67
  %v106 = vpack.c.bf16 %v70, %v69
  %v107 = vpack.c.bf16 %v72, %v71
  %v108 = vpack.c.bf16 %v74, %v73
  %v109 = vpack.c.bf16 %v76, %v75
  %v110 = vpack.c.bf16 %v78, %v77
  %v111 = vld [vmem:[%s1] sm:$0xf]
  %v112 = vld [vmem:[%s1 + $0x4] sm:$0xf]
  %v113 = vld [vmem:[%s1 + $0x8] sm:$0xf]
  %v114 = vld [vmem:[%s1 + $0xc] sm:$0xf]
  %v115 = vld [vmem:[%s2] sm:$0x1]
  %v117 = vlaneseq
  %v118 = vshrl.u32 %v117, 7
  %v119 = vsub.s32 0, %v118
  %v120 = vrot.slane %v115, %v119
  %v126 = vunpack.c.l.b16 %v111
  %v127 = vunpack.c.l.b16 %v112
  %v128 = vunpack.c.l.b16 %v113
  %v129 = vunpack.c.l.b16 %v114
  %v130 = vpack.c.b16 %v127, %v126
  %v131 = vpack.c.b16 %v129, %v128
  %vm134 = vcmask 261120
  %v136 = vsel %vm134, %v79, 0
  %v139 = vsel %vm134, %v80, 0
  %v142 = vsel %vm134, %v81, 0
  %v145 = vsel %vm134, %v82, 0
  %v148 = vsel %vm134, %v83, 0
  %v151 = vsel %vm134, %v84, 0
  %v154 = vsel %vm134, %v85, 0
  %v157 = vsel %vm134, %v86, 0
  %v160 = vsel %vm134, %v87, 0
  %v163 = vsel %vm134, %v88, 0
  %v166 = vsel %vm134, %v89, 0
  %v169 = vsel %vm134, %v90, 0
  %v172 = vsel %vm134, %v91, 0
  %v175 = vsel %vm134, %v92, 0
  %v178 = vsel %vm134, %v93, 0
  %v181 = vsel %vm134, %v94, 0
  %v184 = vsel %vm134, %v95, 0
  %v187 = vsel %vm134, %v96, 0
  %v190 = vsel %vm134, %v97, 0
  %v193 = vsel %vm134, %v98, 0
  %v196 = vsel %vm134, %v99, 0
  %v199 = vsel %vm134, %v100, 0
  %v202 = vsel %vm134, %v101, 0
  %v205 = vsel %vm134, %v102, 0
  %v208 = vsel %vm134, %v103, 0
  %v211 = vsel %vm134, %v104, 0
  %v214 = vsel %vm134, %v105, 0
  %v217 = vsel %vm134, %v106, 0
  %v220 = vsel %vm134, %v107, 0
  %v223 = vsel %vm134, %v108, 0
  %v226 = vsel %vm134, %v109, 0
  %v229 = vsel %vm134, %v110, 0
  %231 = vmatprep.subr.bf16.mxu0 0
  %232 = vmatpush1.bf16.msra.mxu0 %v130
  %233 = vmatprep.subr.bf16.mxu0 0
  %234 = vmatpush1.bf16.msra.mxu0 %v131
  %235 = vmatprep.subr.bf16.mxu0 0
  %236 = vmatpush1.bf16.msra.mxu0 0
  %237 = vmatprep.subr.bf16.mxu0 0
  %238 = vmatpush1.bf16.msra.mxu0 0
  %239 = vmatprep.subr.bf16.mxu0 0
  %240 = vmatpush1.bf16.msra.mxu0 0
  %241 = vmatprep.subr.bf16.mxu0 0
  %242 = vmatpush1.bf16.msra.mxu0 0
  %243 = vmatprep.subr.bf16.mxu0 0
  %244 = vmatpush1.bf16.msra.mxu0 0
  %245 = vmatprep.subr.bf16.mxu0 0
  %246 = vmatpush1.bf16.msra.mxu0 0
  %247 = vmatprep.subr.bf16.mxu0 0
  %248 = vmatpush1.bf16.msra.mxu0 0
  %249 = vmatprep.subr.bf16.mxu0 0
  %250 = vmatpush1.bf16.msra.mxu0 0
  %251 = vmatprep.subr.bf16.mxu0 0
  %252 = vmatpush1.bf16.msra.mxu0 0
  %253 = vmatprep.subr.bf16.mxu0 0
  %254 = vmatpush1.bf16.msra.mxu0 0
  %255 = vmatprep.subr.bf16.mxu0 0
  %256 = vmatpush1.bf16.msra.mxu0 0
  %257 = vmatprep.subr.bf16.mxu0 0
  %258 = vmatpush1.bf16.msra.mxu0 0
  %259 = vmatprep.subr.bf16.mxu0 0
  %260 = vmatpush1.bf16.msra.mxu0 0
  %261 = vmatprep.subr.bf16.mxu0 0
  %262 = vmatpush1.bf16.msra.mxu0 0
  %263 = vmatprep.mubr.bf16.mxu0 0
  %264 = vmatmul.mubr.bf16.gmra.mrb[0].mxu0 %v136
  %v265 = vpop.f32.mrb[0].mxu0
  %v266 = vadd.f32 %v120, %v265
  %v267 = vpop.f32.mrb[0].mxu0
  %v268 = vpop.f32.mrb[0].mxu0
  %v269 = vadd.f32 %v120, %v268
  %v270 = vpop.f32.mrb[0].mxu0
  %271 = vmatprep.mubr.bf16.mxu0 0
  %272 = vmatmul.mubr.bf16.gmra.mrb[0].mxu0 %v139
  %v273 = vpop.f32.mrb[0].mxu0
  %v274 = vadd.f32 %v120, %v273
  %v275 = vpop.f32.mrb[0].mxu0
  %v276 = vpop.f32.mrb[0].mxu0
  %v277 = vadd.f32 %v120, %v276
  %v278 = vpop.f32.mrb[0].mxu0
  %279 = vmatprep.mubr.bf16.mxu0 0
  %280 = vmatmul.mubr.bf16.gmra.mrb[0].mxu0 %v142
  %v281 = vpop.f32.mrb[0].mxu0
  %v282 = vadd.f32 %v120, %v281
  %v283 = vpop.f32.mrb[0].mxu0
  %v284 = vpop.f32.mrb[0].mxu0
  %v285 = vadd.f32 %v120, %v284
  %v286 = vpop.f32.mrb[0].mxu0
  %287 = vmatprep.mubr.bf16.mxu0 0
  %288 = vmatmul.mubr.bf16.gmra.mrb[0].mxu0 %v145
  %v289 = vpop.f32.mrb[0].mxu0
  %v290 = vadd.f32 %v120, %v289
  %v291 = vpop.f32.mrb[0].mxu0
  %v292 = vpop.f32.mrb[0].mxu0
  %v293 = vadd.f32 %v120, %v292
  %v294 = vpop.f32.mrb[0].mxu0
  %295 = vmatprep.mubr.bf16.mxu0 0
  %296 = vmatmul.mubr.bf16.gmra.mrb[0].mxu0 %v148
  %v297 = vpop.f32.mrb[0].mxu0
  %v298 = vadd.f32 %v120, %v297
  %v299 = vpop.f32.mrb[0].mxu0
  %v300 = vpop.f32.mrb[0].mxu0
  %v301 = vadd.f32 %v120, %v300
  %v302 = vpop.f32.mrb[0].mxu0
  %303 = vmatprep.mubr.bf16.mxu0 0
  %304 = vmatmul.mubr.bf16.gmra.mrb[0].mxu0 %v151
  %v305 = vpop.f32.mrb[0].mxu0
  %v306 = vadd.f32 %v120, %v305
  %v307 = vpop.f32.mrb[0].mxu0
  %v308 = vpop.f32.mrb[0].mxu0
  %v309 = vadd.f32 %v120, %v308
  %v310 = vpop.f32.mrb[0].mxu0
  %311 = vmatprep.mubr.bf16.mxu0 0
  %312 = vmatmul.mubr.bf16.gmra.mrb[0].mxu0 %v154
  %v313 = vpop.f32.mrb[0].mxu0
  %v314 = vadd.f32 %v120, %v313
  %v315 = vpop.f32.mrb[0].mxu0
  %v316 = vpop.f32.mrb[0].mxu0
  %v317 = vadd.f32 %v120, %v316
  %v318 = vpop.f32.mrb[0].mxu0
  %319 = vmatprep.mubr.bf16.mxu0 0
  %320 = vmatmul.mubr.bf16.gmra.mrb[0].mxu0 %v157
  %v321 = vpop.f32.mrb[0].mxu0
  %v322 = vadd.f32 %v120, %v321
  %v323 = vpop.f32.mrb[0].mxu0
  %v324 = vpop.f32.mrb[0].mxu0
  %v325 = vadd.f32 %v120, %v324
  %v326 = vpop.f32.mrb[0].mxu0
  %327 = vmatprep.mubr.bf16.mxu0 0
  %328 = vmatmul.mubr.bf16.gmra.mrb[0].mxu0 %v160
  %v329 = vpop.f32.mrb[0].mxu0
  %v330 = vadd.f32 %v120, %v329
  %v331 = vpop.f32.mrb[0].mxu0
  %v332 = vpop.f32.mrb[0].mxu0
  %v333 = vadd.f32 %v120, %v332
  %v334 = vpop.f32.mrb[0].mxu0
  %335 = vmatprep.mubr.bf16.mxu0 0
  %336 = vmatmul.mubr.bf16.gmra.mrb[0].mxu0 %v163
  %v337 = vpop.f32.mrb[0].mxu0
  %v338 = vadd.f32 %v120, %v337
  %v339 = vpop.f32.mrb[0].mxu0
  %v340 = vpop.f32.mrb[0].mxu0
  %v341 = vadd.f32 %v120, %v340
  %v342 = vpop.f32.mrb[0].mxu0
  %343 = vmatprep.mubr.bf16.mxu0 0
  %344 = vmatmul.mubr.bf16.gmra.mrb[0].mxu0 %v166
  %v345 = vpop.f32.mrb[0].mxu0
  %v346 = vadd.f32 %v120, %v345
  %v347 = vpop.f32.mrb[0].mxu0
  %v348 = vpop.f32.mrb[0].mxu0
  %v349 = vadd.f32 %v120, %v348
  %v350 = vpop.f32.mrb[0].mxu0
  %351 = vmatprep.mubr.bf16.mxu0 0
  %352 = vmatmul.mubr.bf16.gmra.mrb[0].mxu0 %v169
  %v353 = vpop.f32.mrb[0].mxu0
  %v354 = vadd.f32 %v120, %v353
  %v355 = vpop.f32.mrb[0].mxu0
  %v356 = vpop.f32.mrb[0].mxu0
  %v357 = vadd.f32 %v120, %v356
  %v358 = vpop.f32.mrb[0].mxu0
  %359 = vmatprep.mubr.bf16.mxu0 0
  %360 = vmatmul.mubr.bf16.gmra.mrb[0].mxu0 %v172
  %v361 = vpop.f32.mrb[0].mxu0
  %v362 = vadd.f32 %v120, %v361
  %v363 = vpop.f32.mrb[0].mxu0
  %v364 = vpop.f32.mrb[0].mxu0
  %v365 = vadd.f32 %v120, %v364
  %v366 = vpop.f32.mrb[0].mxu0
  %367 = vmatprep.mubr.bf16.mxu0 0
  %368 = vmatmul.mubr.bf16.gmra.mrb[0].mxu0 %v175
  %v369 = vpop.f32.mrb[0].mxu0
  %v370 = vadd.f32 %v120, %v369
  %v371 = vpop.f32.mrb[0].mxu0
  %v372 = vpop.f32.mrb[0].mxu0
  %v373 = vadd.f32 %v120, %v372
  %v374 = vpop.f32.mrb[0].mxu0
  %375 = vmatprep.mubr.bf16.mxu0 0
  %376 = vmatmul.mubr.bf16.gmra.mrb[0].mxu0 %v178
  %v377 = vpop.f32.mrb[0].mxu0
  %v378 = vadd.f32 %v120, %v377
  %v379 = vpop.f32.mrb[0].mxu0
  %v380 = vpop.f32.mrb[0].mxu0
  %v381 = vadd.f32 %v120, %v380
  %v382 = vpop.f32.mrb[0].mxu0
  %383 = vmatprep.mubr.bf16.mxu0 0
  %384 = vmatmul.mubr.bf16.gmra.mrb[0].mxu0 %v181
  %v385 = vpop.f32.mrb[0].mxu0
  %v386 = vadd.f32 %v120, %v385
  %v387 = vpop.f32.mrb[0].mxu0
  %v388 = vpop.f32.mrb[0].mxu0
  %v389 = vadd.f32 %v120, %v388
  %v390 = vpop.f32.mrb[0].mxu0
  %391 = vmatprep.mubr.bf16.mxu0 0
  %392 = vmatmul.mubr.bf16.gmra.mrb[0].mxu0 %v184
  %v393 = vpop.f32.mrb[0].mxu0
  %v394 = vadd.f32 %v120, %v393
  %v395 = vpop.f32.mrb[0].mxu0
  %v396 = vpop.f32.mrb[0].mxu0
  %v397 = vadd.f32 %v120, %v396
  %v398 = vpop.f32.mrb[0].mxu0
  %399 = vmatprep.mubr.bf16.mxu0 0
  %400 = vmatmul.mubr.bf16.gmra.mrb[0].mxu0 %v187
  %v401 = vpop.f32.mrb[0].mxu0
  %v402 = vadd.f32 %v120, %v401
  %v403 = vpop.f32.mrb[0].mxu0
  %v404 = vpop.f32.mrb[0].mxu0
  %v405 = vadd.f32 %v120, %v404
  %v406 = vpop.f32.mrb[0].mxu0
  %407 = vmatprep.mubr.bf16.mxu0 0
  %408 = vmatmul.mubr.bf16.gmra.mrb[0].mxu0 %v190
  %v409 = vpop.f32.mrb[0].mxu0
  %v410 = vadd.f32 %v120, %v409
  %v411 = vpop.f32.mrb[0].mxu0
  %v412 = vpop.f32.mrb[0].mxu0
  %v413 = vadd.f32 %v120, %v412
  %v414 = vpop.f32.mrb[0].mxu0
  %415 = vmatprep.mubr.bf16.mxu0 0
  %416 = vmatmul.mubr.bf16.gmra.mrb[0].mxu0 %v193
  %v417 = vpop.f32.mrb[0].mxu0
  %v418 = vadd.f32 %v120, %v417
  %v419 = vpop.f32.mrb[0].mxu0
  %v420 = vpop.f32.mrb[0].mxu0
  %v421 = vadd.f32 %v120, %v420
  %v422 = vpop.f32.mrb[0].mxu0
  %423 = vmatprep.mubr.bf16.mxu0 0
  %424 = vmatmul.mubr.bf16.gmra.mrb[0].mxu0 %v196
  %v425 = vpop.f32.mrb[0].mxu0
  %v426 = vadd.f32 %v120, %v425
  %v427 = vpop.f32.mrb[0].mxu0
  %v428 = vpop.f32.mrb[0].mxu0
  %v429 = vadd.f32 %v120, %v428
  %v430 = vpop.f32.mrb[0].mxu0
  %431 = vmatprep.mubr.bf16.mxu0 0
  %432 = vmatmul.mubr.bf16.gmra.mrb[0].mxu0 %v199
  %v433 = vpop.f32.mrb[0].mxu0
  %v434 = vadd.f32 %v120, %v433
  %v435 = vpop.f32.mrb[0].mxu0
  %v436 = vpop.f32.mrb[0].mxu0
  %v437 = vadd.f32 %v120, %v436
  %v438 = vpop.f32.mrb[0].mxu0
  %439 = vmatprep.mubr.bf16.mxu0 0
  %440 = vmatmul.mubr.bf16.gmra.mrb[0].mxu0 %v202
  %v441 = vpop.f32.mrb[0].mxu0
  %v442 = vadd.f32 %v120, %v441
  %v443 = vpop.f32.mrb[0].mxu0
  %v444 = vpop.f32.mrb[0].mxu0
  %v445 = vadd.f32 %v120, %v444
  %v446 = vpop.f32.mrb[0].mxu0
  %447 = vmatprep.mubr.bf16.mxu0 0
  %448 = vmatmul.mubr.bf16.gmra.mrb[0].mxu0 %v205
  %v449 = vpop.f32.mrb[0].mxu0
  %v450 = vadd.f32 %v120, %v449
  %v451 = vpop.f32.mrb[0].mxu0
  %v452 = vpop.f32.mrb[0].mxu0
  %v453 = vadd.f32 %v120, %v452
  %v454 = vpop.f32.mrb[0].mxu0
  %455 = vmatprep.mubr.bf16.mxu0 0
  %456 = vmatmul.mubr.bf16.gmra.mrb[0].mxu0 %v208
  %v457 = vpop.f32.mrb[0].mxu0
  %v458 = vadd.f32 %v120, %v457
  %v459 = vpop.f32.mrb[0].mxu0
  %v460 = vpop.f32.mrb[0].mxu0
  %v461 = vadd.f32 %v120, %v460
  %v462 = vpop.f32.mrb[0].mxu0
  %463 = vmatprep.mubr.bf16.mxu0 0
  %464 = vmatmul.mubr.bf16.gmra.mrb[0].mxu0 %v211
  %v465 = vpop.f32.mrb[0].mxu0
  %v466 = vadd.f32 %v120, %v465
  %v467 = vpop.f32.mrb[0].mxu0
  %v468 = vpop.f32.mrb[0].mxu0
  %v469 = vadd.f32 %v120, %v468
  %v470 = vpop.f32.mrb[0].mxu0
  %471 = vmatprep.mubr.bf16.mxu0 0
  %472 = vmatmul.mubr.bf16.gmra.mrb[0].mxu0 %v214
  %v473 = vpop.f32.mrb[0].mxu0
  %v474 = vadd.f32 %v120, %v473
  %v475 = vpop.f32.mrb[0].mxu0
  %v476 = vpop.f32.mrb[0].mxu0
  %v477 = vadd.f32 %v120, %v476
  %v478 = vpop.f32.mrb[0].mxu0
  %479 = vmatprep.mubr.bf16.mxu0 0
  %480 = vmatmul.mubr.bf16.gmra.mrb[0].mxu0 %v217
  %v481 = vpop.f32.mrb[0].mxu0
  %v482 = vadd.f32 %v120, %v481
  %v483 = vpop.f32.mrb[0].mxu0
  %v484 = vpop.f32.mrb[0].mxu0
  %v485 = vadd.f32 %v120, %v484
  %v486 = vpop.f32.mrb[0].mxu0
  %487 = vmatprep.mubr.bf16.mxu0 0
  %488 = vmatmul.mubr.bf16.gmra.mrb[0].mxu0 %v220
  %v489 = vpop.f32.mrb[0].mxu0
  %v490 = vadd.f32 %v120, %v489
  %v491 = vpop.f32.mrb[0].mxu0
  %v492 = vpop.f32.mrb[0].mxu0
  %v493 = vadd.f32 %v120, %v492
  %v494 = vpop.f32.mrb[0].mxu0
  %495 = vmatprep.mubr.bf16.mxu0 0
  %496 = vmatmul.mubr.bf16.gmra.mrb[0].mxu0 %v223
  %v497 = vpop.f32.mrb[0].mxu0
  %v498 = vadd.f32 %v120, %v497
  %v499 = vpop.f32.mrb[0].mxu0
  %v500 = vpop.f32.mrb[0].mxu0
  %v501 = vadd.f32 %v120, %v500
  %v502 = vpop.f32.mrb[0].mxu0
  %503 = vmatprep.mubr.bf16.mxu0 0
  %504 = vmatmul.mubr.bf16.gmra.mrb[0].mxu0 %v226
  %v505 = vpop.f32.mrb[0].mxu0
  %v506 = vadd.f32 %v120, %v505
  %v507 = vpop.f32.mrb[0].mxu0
  %v508 = vpop.f32.mrb[0].mxu0
  %v509 = vadd.f32 %v120, %v508
  %v510 = vpop.f32.mrb[0].mxu0
  %511 = vmatprep.mubr.bf16.mxu0 0
  %512 = vmatmul.mubr.bf16.gmra.mrb[0].mxu0 %v229
  %v513 = vpop.f32.mrb[0].mxu0
  %v514 = vadd.f32 %v120, %v513
  %v515 = vpop.f32.mrb[0].mxu0
  %v516 = vpop.f32.mrb[0].mxu0
  %v517 = vadd.f32 %v120, %v516
  %v518 = vpop.f32.mrb[0].mxu0
  %519 = vdwg.mxu0
  %v520 = vmax.f32 %v266, 0.0
  %v521 = vmax.f32 %v269, 0.0
  %v522 = vmax.f32 %v274, 0.0
  %v523 = vmax.f32 %v277, 0.0
  %v524 = vmax.f32 %v282, 0.0
  %v525 = vmax.f32 %v285, 0.0
  %v526 = vmax.f32 %v290, 0.0
  %v527 = vmax.f32 %v293, 0.0
  %v528 = vmax.f32 %v298, 0.0
  %v529 = vmax.f32 %v301, 0.0
  %v530 = vmax.f32 %v306, 0.0
  %v531 = vmax.f32 %v309, 0.0
  %v532 = vmax.f32 %v314, 0.0
  %v533 = vmax.f32 %v317, 0.0
  %v534 = vmax.f32 %v322, 0.0
  %v535 = vmax.f32 %v325, 0.0
  %v536 = vmax.f32 %v330, 0.0
  %v537 = vmax.f32 %v333, 0.0
  %v538 = vmax.f32 %v338, 0.0
  %v539 = vmax.f32 %v341, 0.0
  %v540 = vmax.f32 %v346, 0.0
  %v541 = vmax.f32 %v349, 0.0
  %v542 = vmax.f32 %v354, 0.0
  %v543 = vmax.f32 %v357, 0.0
  %v544 = vmax.f32 %v362, 0.0
  %v545 = vmax.f32 %v365, 0.0
  %v546 = vmax.f32 %v370, 0.0
  %v547 = vmax.f32 %v373, 0.0
  %v548 = vmax.f32 %v378, 0.0
  %v549 = vmax.f32 %v381, 0.0
  %v550 = vmax.f32 %v386, 0.0
  %v551 = vmax.f32 %v389, 0.0
  %v552 = vmax.f32 %v394, 0.0
  %v553 = vmax.f32 %v397, 0.0
  %v554 = vmax.f32 %v402, 0.0
  %v555 = vmax.f32 %v405, 0.0
  %v556 = vmax.f32 %v410, 0.0
  %v557 = vmax.f32 %v413, 0.0
  %v558 = vmax.f32 %v418, 0.0
  %v559 = vmax.f32 %v421, 0.0
  %v560 = vmax.f32 %v426, 0.0
  %v561 = vmax.f32 %v429, 0.0
  %v562 = vmax.f32 %v434, 0.0
  %v563 = vmax.f32 %v437, 0.0
  %v564 = vmax.f32 %v442, 0.0
  %v565 = vmax.f32 %v445, 0.0
  %v566 = vmax.f32 %v450, 0.0
  %v567 = vmax.f32 %v453, 0.0
  %v568 = vmax.f32 %v458, 0.0
  %v569 = vmax.f32 %v461, 0.0
  %v570 = vmax.f32 %v466, 0.0
  %v571 = vmax.f32 %v469, 0.0
  %v572 = vmax.f32 %v474, 0.0
  %v573 = vmax.f32 %v477, 0.0
  %v574 = vmax.f32 %v482, 0.0
  %v575 = vmax.f32 %v485, 0.0
  %v576 = vmax.f32 %v490, 0.0
  %v577 = vmax.f32 %v493, 0.0
  %v578 = vmax.f32 %v498, 0.0
  %v579 = vmax.f32 %v501, 0.0
  %v580 = vmax.f32 %v506, 0.0
  %v581 = vmax.f32 %v509, 0.0
  %v582 = vmax.f32 %v514, 0.0
  %v583 = vmax.f32 %v517, 0.0
  %584 = vst.msk [vmem:[%s3] sm:$0xff] %vm134, %v520
  %585 = vst.msk [vmem:[%s3 + $0x8] sm:$0xff] %vm134, %v521
  %586 = vst.msk [vmem:[%s3 + $0x10] sm:$0xff] %vm134, %v522
  %587 = vst.msk [vmem:[%s3 + $0x18] sm:$0xff] %vm134, %v523
  %588 = vst.msk [vmem:[%s3 + $0x20] sm:$0xff] %vm134, %v524
  %589 = vst.msk [vmem:[%s3 + $0x28] sm:$0xff] %vm134, %v525
  %590 = vst.msk [vmem:[%s3 + $0x30] sm:$0xff] %vm134, %v526
  %591 = vst.msk [vmem:[%s3 + $0x38] sm:$0xff] %vm134, %v527
  %592 = vst.msk [vmem:[%s3 + $0x40] sm:$0xff] %vm134, %v528
  %593 = vst.msk [vmem:[%s3 + $0x48] sm:$0xff] %vm134, %v529
  %594 = vst.msk [vmem:[%s3 + $0x50] sm:$0xff] %vm134, %v530
  %595 = vst.msk [vmem:[%s3 + $0x58] sm:$0xff] %vm134, %v531
  %596 = vst.msk [vmem:[%s3 + $0x60] sm:$0xff] %vm134, %v532
  %597 = vst.msk [vmem:[%s3 + $0x68] sm:$0xff] %vm134, %v533
  %598 = vst.msk [vmem:[%s3 + $0x70] sm:$0xff] %vm134, %v534
  %599 = vst.msk [vmem:[%s3 + $0x78] sm:$0xff] %vm134, %v535
  %600 = vst.msk [vmem:[%s3 + $0x80] sm:$0xff] %vm134, %v536
  %601 = vst.msk [vmem:[%s3 + $0x88] sm:$0xff] %vm134, %v537
  %602 = vst.msk [vmem:[%s3 + $0x90] sm:$0xff] %vm134, %v538
  %603 = vst.msk [vmem:[%s3 + $0x98] sm:$0xff] %vm134, %v539
  %604 = vst.msk [vmem:[%s3 + $0xa0] sm:$0xff] %vm134, %v540
  %605 = vst.msk [vmem:[%s3 + $0xa8] sm:$0xff] %vm134, %v541
  %606 = vst.msk [vmem:[%s3 + $0xb0] sm:$0xff] %vm134, %v542
  %607 = vst.msk [vmem:[%s3 + $0xb8] sm:$0xff] %vm134, %v543
  %608 = vst.msk [vmem:[%s3 + $0xc0] sm:$0xff] %vm134, %v544
  %609 = vst.msk [vmem:[%s3 + $0xc8] sm:$0xff] %vm134, %v545
  %610 = vst.msk [vmem:[%s3 + $0xd0] sm:$0xff] %vm134, %v546
  %611 = vst.msk [vmem:[%s3 + $0xd8] sm:$0xff] %vm134, %v547
  %612 = vst.msk [vmem:[%s3 + $0xe0] sm:$0xff] %vm134, %v548
  %613 = vst.msk [vmem:[%s3 + $0xe8] sm:$0xff] %vm134, %v549
  %614 = vst.msk [vmem:[%s3 + $0xf0] sm:$0xff] %vm134, %v550
  %615 = vst.msk [vmem:[%s3 + $0xf8] sm:$0xff] %vm134, %v551
  %616 = vst.msk [vmem:[%s3 + $0x100] sm:$0xff] %vm134, %v552
  %617 = vst.msk [vmem:[%s3 + $0x108] sm:$0xff] %vm134, %v553
  %618 = vst.msk [vmem:[%s3 + $0x110] sm:$0xff] %vm134, %v554
  %619 = vst.msk [vmem:[%s3 + $0x118] sm:$0xff] %vm134, %v555
  %620 = vst.msk [vmem:[%s3 + $0x120] sm:$0xff] %vm134, %v556
  %621 = vst.msk [vmem:[%s3 + $0x128] sm:$0xff] %vm134, %v557
  %622 = vst.msk [vmem:[%s3 + $0x130] sm:$0xff] %vm134, %v558
  %623 = vst.msk [vmem:[%s3 + $0x138] sm:$0xff] %vm134, %v559
  %624 = vst.msk [vmem:[%s3 + $0x140] sm:$0xff] %vm134, %v560
  %625 = vst.msk [vmem:[%s3 + $0x148] sm:$0xff] %vm134, %v561
  %626 = vst.msk [vmem:[%s3 + $0x150] sm:$0xff] %vm134, %v562
  %627 = vst.msk [vmem:[%s3 + $0x158] sm:$0xff] %vm134, %v563
  %628 = vst.msk [vmem:[%s3 + $0x160] sm:$0xff] %vm134, %v564
  %629 = vst.msk [vmem:[%s3 + $0x168] sm:$0xff] %vm134, %v565
  %630 = vst.msk [vmem:[%s3 + $0x170] sm:$0xff] %vm134, %v566
  %631 = vst.msk [vmem:[%s3 + $0x178] sm:$0xff] %vm134, %v567
  %632 = vst.msk [vmem:[%s3 + $0x180] sm:$0xff] %vm134, %v568
  %633 = vst.msk [vmem:[%s3 + $0x188] sm:$0xff] %vm134, %v569
  %634 = vst.msk [vmem:[%s3 + $0x190] sm:$0xff] %vm134, %v570
  %635 = vst.msk [vmem:[%s3 + $0x198] sm:$0xff] %vm134, %v571
  %636 = vst.msk [vmem:[%s3 + $0x1a0] sm:$0xff] %vm134, %v572
  %637 = vst.msk [vmem:[%s3 + $0x1a8] sm:$0xff] %vm134, %v573
  %638 = vst.msk [vmem:[%s3 + $0x1b0] sm:$0xff] %vm134, %v574
  %639 = vst.msk [vmem:[%s3 + $0x1b8] sm:$0xff] %vm134, %v575
  %640 = vst.msk [vmem:[%s3 + $0x1c0] sm:$0xff] %vm134, %v576
  %641 = vst.msk [vmem:[%s3 + $0x1c8] sm:$0xff] %vm134, %v577
  %642 = vst.msk [vmem:[%s3 + $0x1d0] sm:$0xff] %vm134, %v578
  %643 = vst.msk [vmem:[%s3 + $0x1d8] sm:$0xff] %vm134, %v579
  %644 = vst.msk [vmem:[%s3 + $0x1e0] sm:$0xff] %vm134, %v580
  %645 = vst.msk [vmem:[%s3 + $0x1e8] sm:$0xff] %vm134, %v581
  %646 = vst.msk [vmem:[%s3 + $0x1f0] sm:$0xff] %vm134, %v582
  %647 = vst.msk [vmem:[%s3 + $0x1f8] sm:$0xff] %vm134, %v583
  // Predicated region
  $region14: #{_forward.1} parent=0 // pred_check
    _
  $region15: #{_forward.1} parent=0 // pred_check_branch
    %649 = sbr.rel (0) target = $region17
  $region16: #{_forward.1} parent=0 // pred_region
    _
  $region17: #{_forward.1} parent=0 // pred_fallthru
    _
  // Predicated region
  $region18: #{_forward.1} parent=0 // pred_check
    _
  $region19: #{_forward.1} parent=0 // pred_check_branch
    %651 = sbr.rel (0) target = $region21
  $region20: #{_forward.1} parent=0 // pred_region
    _
  $region21: #{_forward.1} parent=0 // pred_fallthru
    _

</llo_original>
